<compile_context>
chip_gen: v6e
topology: v6e:2x2x1
jax: 0.10.0
libtpu: 0.0.40
codegen_flags: <defaults>
</compile_context>

<pallas_src>
import functools
import math

import jax
import jax.numpy as jnp
from jax import lax
from jax.experimental import pallas as pl
from jax.experimental.pallas import tpu as pltpu

_NEG_FILL = -9e15  # same constant the PyTorch module uses for masked_fill


def _nce_kernel(pos_ref, q_ref, k_ref, rank_ref, nll_ref,
                m_sc, l_sc, cnt_sc, *, temperature, tm, kc, batch):
    """Grid step (i, k): query rows [i*tm, (i+1)*tm) x key rows [k*kc, (k+1)*kc)."""
    half = batch // 2
    fill = _NEG_FILL / temperature  # PyTorch masks self with -9e15 BEFORE dividing by T

    kk = pl.program_id(1)

    @pl.when(kk == 0)
    def _():
        m_sc[...] = jnp.full_like(m_sc, -jnp.inf)
        l_sc[...] = jnp.zeros_like(l_sc)
        cnt_sc[...] = jnp.zeros_like(cnt_sc)

    # simT[r, c] = cos_sim(key k*kc+r, query i*tm+c) / T   (1/sqrt(T) is folded
    # into both operands by the wrapper); MXU matmul with f32 accumulation.
    simT = lax.dot_general(
        k_ref[...], q_ref[...],
        dimension_numbers=(((1,), (1,)), ((), ())),
        preferred_element_type=jnp.float32)               # (kc, tm)

    row0 = pl.program_id(0) * tm
    key0 = kk * kc
    key_idx = key0 + lax.broadcasted_iota(jnp.int32, simT.shape, 0)   # global key row
    qry_idx = row0 + lax.broadcasted_iota(jnp.int32, simT.shape, 1)   # global query row

    simT = jnp.where(key_idx == qry_idx, fill, simT)      # self-mask

    pos_idx = qry_idx + half
    pos_idx = jnp.where(pos_idx >= batch, pos_idx - batch, pos_idx)
    is_pos = key_idx == pos_idx

    pos_val = pos_ref[...]                                 # (1, tm) f32, already / T

    # Running rank: entries strictly greater than the positive.  The positive is
    # masked explicitly (pos_val comes from the wrapper, so it is not guaranteed
    # bit-identical to its slab entry); the self entry equals `fill` << pos_val.
    gt = (simT > pos_val) & jnp.logical_not(is_pos)
    cnt_sc[...] += jnp.sum(gt.astype(jnp.int32), axis=0, keepdims=True)

    # Online logsumexp over the key axis (the self entry contributes
    # exp(fill - m) == 0, matching the reference).
    m_prev = m_sc[...]
    m_new = jnp.maximum(m_prev, jnp.max(simT, axis=0, keepdims=True))
    l_sc[...] = (l_sc[...] * jnp.exp(m_prev - m_new)
                 + jnp.sum(jnp.exp(simT - m_new), axis=0, keepdims=True))
    m_sc[...] = m_new

    @pl.when(kk == pl.num_programs(1) - 1)
    def _():
        rank_ref[...] = cnt_sc[...]                                      # (1, tm)
        nll_ref[...] = m_sc[...] + jnp.log(l_sc[...]) - pos_val          # (1, tm)


def _tpu_generation_and_vmem():
    kind = ""
    try:
        kind = jax.devices()[0].device_kind.lower()
    except Exception:
        pass
    vmem_cap = 128 << 20
    try:
        vmem_cap = int(getattr(pltpu.get_tpu_info(), "vmem_capacity_bytes", vmem_cap))
    except Exception:
        pass
    return kind, vmem_cap


def _plan_tiles(batch, dp, ebytes, budget, tm_pref):
    """Pick (row_tile, key_chunk); key_chunk == batch means resident keys."""
    tm_cands = [c for c in (256, 128, 64, 32, 16, 8)
                if c <= tm_pref and c <= batch and batch % c == 0] or [batch]
    kc_cands = [c for c in (2048, 1024, 512, 256, 128, 64, 32, 16, 8)
                if c < batch and batch % c == 0]

    def est(tm, kcs, kbufs):
        return (kbufs * kcs * dp * ebytes      # key block buffer(s)
                + 2 * tm * dp * ebytes         # double-buffered query tile
                + 5 * kcs * tm * 4             # f32 sim slab + mask/exp/cmp temps
                + 64 * tm)                     # pos_val / outputs / scratch (tiny)

    for tm in tm_cands:                        # prefer resident keys (minimum DMA)
        if est(tm, batch, 1) <= budget:
            return tm, batch
    for tm in tm_cands:                        # flash-style key streaming
        for kcs in kc_cands:
            if est(tm, kcs, 2) <= budget:
                return tm, kcs
    return tm_cands[-1], (kc_cands[-1] if kc_cands else batch)


def nce_loss(inputs: jax.Array, temperature: float = 0.08, *,
             use_bf16_matmul: bool = True, row_tile=None, key_chunk=None):
    """Pallas TPU implementation of NCELoss.forward."""
    B, D = inputs.shape
    assert B % 2 == 0, "NCELoss expects an even batch (positive of i is i + B//2)."

    # --- one-time pre-processing in plain JAX (pre-normalize, fold 1/sqrt(T)) ---
    inv_sqrt_t = 1.0 / math.sqrt(float(temperature))
    xf = inputs.astype(jnp.float32)
    norm = jnp.sqrt(jnp.sum(xf * xf, axis=-1, keepdims=True))
    xn = xf / jnp.maximum(norm, 1e-8) * inv_sqrt_t        # <xn_i, xn_j> == cos_sim/T

    mxu_dtype = jnp.bfloat16 if use_bf16_matmul else jnp.float32
    xn_m = xn.astype(mxu_dtype)

    Dp = max(128, ((D + 127) // 128) * 128)               # full MXU lanes; zero pad
    if Dp != D:
        xn_m = jnp.pad(xn_m, ((0, 0), (0, Dp - D)))

    half = B // 2
    xm32 = xn_m.astype(jnp.float32)
    pos_val = jnp.sum(xm32 * jnp.roll(xm32, -half, axis=0), axis=-1)   # (B,) = sim/T

    # --- generation-aware tiling / VMEM budget -----------------------------------
    kind, vmem_cap = _tpu_generation_and_vmem()
    tm_pref = 128 if any(g in kind for g in ("v2", "v3", "v4", "v5")) else 256
    if vmem_cap >= (100 << 20):                  # 128 MiB chips (v5e / v6e)
        budget = min(vmem_cap - (28 << 20), 100 << 20)
    else:                                        # 64 MiB chips (v7x)
        budget = max(vmem_cap - (12 << 20), vmem_cap // 2)

    tm, kc = _plan_tiles(B, Dp, jnp.dtype(mxu_dtype).itemsize, budget, tm_pref)
    if row_tile is not None:
        tm = int(row_tile)
    if key_chunk is not None:
        kc = int(key_chunk)
    assert B % tm == 0 and B % kc == 0
    num_tiles, num_chunks = B // tm, B // kc
    vmem_limit = int(max(budget, 32 << 20))

    pos2d = pos_val.reshape(num_tiles, tm)

    kernel = functools.partial(_nce_kernel, temperature=float(temperature),
                               tm=tm, kc=kc, batch=B)

    def _run(single_buffer_keys: bool):
        key_kwargs = dict(pipeline_mode=pl.Buffered(1)) if single_buffer_keys else {}
        out = pl.pallas_call(
            kernel,
            grid=(num_tiles, num_chunks),
            in_specs=[
                pl.BlockSpec((1, tm), lambda i, k: (i, 0)),              # positive sims
                pl.BlockSpec((tm, Dp), lambda i, k: (i, 0)),             # query row tile
                pl.BlockSpec((kc, Dp), lambda i, k: (k, 0), **key_kwargs),  # key chunk
            ],
            out_specs=(
                pl.BlockSpec((1, tm), lambda i, k: (i, 0)),              # lane-dense ranks
                pl.BlockSpec((1, tm), lambda i, k: (i, 0)),              # lane-dense nll
            ),
            out_shape=(
                jax.ShapeDtypeStruct((num_tiles, tm), jnp.int32),
                jax.ShapeDtypeStruct((num_tiles, tm), jnp.float32),
            ),
            scratch_shapes=[
                pltpu.VMEM((1, tm), jnp.float32),   # running max
                pltpu.VMEM((1, tm), jnp.float32),   # running sum-exp
                pltpu.VMEM((1, tm), jnp.int32),     # running rank count
            ],
            compiler_params=pltpu.CompilerParams(
                dimension_semantics=("parallel", "arbitrary"),
                vmem_limit_bytes=vmem_limit,
            ),
        )(pos2d, xn_m, xn_m)
        return jax.block_until_ready(out)

    try:
        # Single-buffer the key block when it is grid-invariant (resident keys).
        rank_t, nll_t = _run(single_buffer_keys=(num_chunks == 1))
    except Exception:
        if num_chunks != 1:
            raise
        rank_t, nll_t = _run(single_buffer_keys=False)   # Buffered(1) unsupported here

    positive_ranking = rank_t.reshape(-1)    # (B,) int32 (PyTorch returns int64)
    nll_mean = jnp.mean(nll_t)               # scalar f32
    return positive_ranking, nll_mean


def _reference(inputs: jax.Array, temperature: float = 0.08):
    """Pure-JAX reference mirroring the PyTorch module (for validation)."""
    B = inputs.shape[0]
    norm = jnp.maximum(jnp.linalg.norm(inputs, axis=-1, keepdims=True), 1e-8)
    sim = (inputs @ inputs.T) / (norm * norm.T)
    self_mask = jnp.eye(B, dtype=bool)
    pos_mask = jnp.roll(self_mask, B // 2, axis=0)
    sim = jnp.where(self_mask, _NEG_FILL, sim) / temperature
    pos_vals = jnp.sum(jnp.where(pos_mask, sim, 0.0), axis=-1)
    nll = -pos_vals + jax.nn.logsumexp(sim, axis=-1)
    cat = jnp.concatenate(
        [pos_vals[:, None], jnp.where(pos_mask, _NEG_FILL, sim)], axis=-1)
    ranking = jnp.argmin(jnp.argsort(-cat, axis=-1), axis=-1)
    return ranking, nll.mean()


if __name__ == "__main__":
    T = 0.08
    key0, key1 = jax.random.split(jax.random.PRNGKey(0))

    # --- test 1: small batch, full-f32 MXU path (exact semantics check) ----------
    B, D = 8, 32
    x = jax.random.normal(key0, (B, D), dtype=jnp.float32)
    ref_rank, ref_nll = _reference(x, T)

    rank32, nll32 = nce_loss(x, T, use_bf16_matmul=False)
    jax.block_until_ready((rank32, nll32))
    assert jnp.array_equal(rank32.astype(jnp.int32), ref_rank.astype(jnp.int32)), (
        rank32, ref_rank)
    assert jnp.allclose(nll32, ref_nll, rtol=1e-3, atol=1e-3), (nll32, ref_nll)

    # --- test 2: production bf16-MXU path (rank within one tie, loose nll) -------
    rank16, nll16 = nce_loss(x, T, use_bf16_matmul=True)
    jax.block_until_ready((rank16, nll16))
    assert jnp.all(jnp.abs(rank16.astype(jnp.int32)
                           - ref_rank.astype(jnp.int32)) <= 1), (rank16, ref_rank)
    assert jnp.allclose(nll16, ref_nll, rtol=2e-2, atol=5e-2), (nll16, ref_nll)

    # --- test 3: forced multi-tile + key-streaming path (f32, exact) -------------
    B2, D2 = 16, 40                    # D2 not a multiple of 128 -> exercises padding
    x2 = jax.random.normal(key1, (B2, D2), dtype=jnp.float32)
    ref_rank2, ref_nll2 = _reference(x2, T)
    rank_s, nll_s = nce_loss(x2, T, use_bf16_matmul=False, row_tile=8, key_chunk=8)
    jax.block_until_ready((rank_s, nll_s))
    assert jnp.array_equal(rank_s.astype(jnp.int32), ref_rank2.astype(jnp.int32)), (
        rank_s, ref_rank2)
    assert jnp.allclose(nll_s, ref_nll2, rtol=1e-3, atol=1e-3), (nll_s, ref_nll2)

    print("KERNEL_OK")
</pallas_src>

<mosaic_0001>
module attributes {stable_mosaic.version = 11 : i64} {
  func.func @_nce_kernel(%arg0: i32, %arg1: i32, %arg2: memref<1x8xf32, #tpu.memory_space<vmem>>, %arg3: memref<8x128xf32, #tpu.memory_space<vmem>>, %arg4: memref<8x128xf32, #tpu.memory_space<vmem>>, %arg5: memref<1x8xi32, #tpu.memory_space<vmem>>, %arg6: memref<1x8xf32, #tpu.memory_space<vmem>>, %arg7: memref<1x8xf32, #tpu.memory_space<vmem>>, %arg8: memref<1x8xf32, #tpu.memory_space<vmem>>, %arg9: memref<1x8xi32, #tpu.memory_space<vmem>>) attributes {dimension_semantics = [#tpu.dimension_semantics<parallel>, #tpu.dimension_semantics<arbitrary>], iteration_bounds = array<i64: 1, 1>, scalar_prefetch = 0 : i64, scratch_operands = 3 : i64, tpu.core_type = #tpu.core_type<tc>, window_params = [{transform_indices = @transform_0, window_bounds = array<i64: 1, 8>}, {transform_indices = @transform_1, window_bounds = array<i64: 8, 128>}, {pipeline_mode = #tpu.pipeline_mode<synchronous>, transform_indices = @transform_2, window_bounds = array<i64: 8, 128>}, {transform_indices = @transform_3, window_bounds = array<i64: 1, 8>}, {transform_indices = @transform_4, window_bounds = array<i64: 1, 8>}]} {
    %c0_i32 = arith.constant 0 : i32
    %0 = arith.cmpi eq, %arg1, %c0_i32 : i32
    %1 = arith.extui %0 : i1 to i32
    %c0_i32_0 = arith.constant 0 : i32
    %2 = arith.cmpi ne, %1, %c0_i32_0 : i32
    scf.if %2 {
      %cst_28 = arith.constant 0xFF800000 : f32
      %55 = vector.broadcast %cst_28 : f32 to vector<1x8xf32>
      %c0_29 = arith.constant 0 : index
      %c0_30 = arith.constant 0 : index
      %56 = vector.load %arg7[%c0_29, %c0_30] : memref<1x8xf32, #tpu.memory_space<vmem>>, vector<1x8xf32>
      tpu.vector_store %arg7[%c0_29, %c0_30], %55 {strides = array<i32>} : memref<1x8xf32, #tpu.memory_space<vmem>>, vector<1x8xf32>,
      %cst_31 = arith.constant 0.000000e+00 : f32
      %57 = vector.broadcast %cst_31 : f32 to vector<1x8xf32>
      %c0_32 = arith.constant 0 : index
      %c0_33 = arith.constant 0 : index
      %58 = vector.load %arg8[%c0_32, %c0_33] : memref<1x8xf32, #tpu.memory_space<vmem>>, vector<1x8xf32>
      tpu.vector_store %arg8[%c0_32, %c0_33], %57 {strides = array<i32>} : memref<1x8xf32, #tpu.memory_space<vmem>>, vector<1x8xf32>,
      %c0_i32_34 = arith.constant 0 : i32
      %59 = vector.broadcast %c0_i32_34 : i32 to vector<1x8xi32>
      %c0_35 = arith.constant 0 : index
      %c0_36 = arith.constant 0 : index
      %60 = vector.load %arg9[%c0_35, %c0_36] : memref<1x8xi32, #tpu.memory_space<vmem>>, vector<1x8xi32>
      tpu.vector_store %arg9[%c0_35, %c0_36], %59 {strides = array<i32>} : memref<1x8xi32, #tpu.memory_space<vmem>>, vector<1x8xi32>,
    } else {
    }
    %c0 = arith.constant 0 : index
    %c0_1 = arith.constant 0 : index
    %3 = vector.load %arg4[%c0, %c0_1] : memref<8x128xf32, #tpu.memory_space<vmem>>, vector<8x128xf32>
    %c0_2 = arith.constant 0 : index
    %c0_3 = arith.constant 0 : index
    %4 = vector.load %arg3[%c0_2, %c0_3] : memref<8x128xf32, #tpu.memory_space<vmem>>, vector<8x128xf32>
    %cst = arith.constant dense<0.000000e+00> : vector<8x8xf32>
    %5 = tpu.matmul %3, %4, %cst {dimension_numbers = #tpu.dot_dimension_numbers<[1], [1], [0], [0], [0, 0, 1, 0], [], []>} : vector<8x128xf32>, vector<8x128xf32>, vector<8x8xf32> -> vector<8x8xf32>
    %c8_i32 = arith.constant 8 : i32
    %6 = arith.muli %arg0, %c8_i32 : i32
    %c8_i32_4 = arith.constant 8 : i32
    %7 = arith.muli %arg1, %c8_i32_4 : i32
    %8 = tpu.iota {dimensions = array<i32: 0>} : vector<8x8xi32>
    %9 = vector.broadcast %7 : i32 to vector<8x8xi32>
    %10 = arith.addi %9, %8 : vector<8x8xi32>
    %11 = tpu.iota {dimensions = array<i32: 1>} : vector<8x8xi32>
    %12 = vector.broadcast %6 : i32 to vector<8x8xi32>
    %13 = arith.addi %12, %11 : vector<8x8xi32>
    %14 = arith.cmpi eq, %10, %13 : vector<8x8xi32>
    %cst_5 = arith.constant -1.125000e+17 : f32
    %15 = vector.broadcast %cst_5 : f32 to vector<8x8xf32>
    %16 = arith.select %14, %15, %5 : vector<8x8xi1>, vector<8x8xf32>
    %c4_i32 = arith.constant 4 : i32
    %17 = vector.broadcast %c4_i32 : i32 to vector<8x8xi32>
    %18 = arith.addi %13, %17 : vector<8x8xi32>
    %c8_i32_6 = arith.constant 8 : i32
    %19 = vector.broadcast %c8_i32_6 : i32 to vector<8x8xi32>
    %20 = arith.cmpi sge, %18, %19 : vector<8x8xi32>
    %c8_i32_7 = arith.constant 8 : i32
    %21 = vector.broadcast %c8_i32_7 : i32 to vector<8x8xi32>
    %22 = arith.subi %18, %21 : vector<8x8xi32>
    %23 = arith.select %20, %22, %18 : vector<8x8xi1>, vector<8x8xi32>
    %24 = arith.cmpi eq, %10, %23 : vector<8x8xi32>
    %c0_8 = arith.constant 0 : index
    %c0_9 = arith.constant 0 : index
    %25 = vector.load %arg2[%c0_8, %c0_9] : memref<1x8xf32, #tpu.memory_space<vmem>>, vector<1x8xf32>
    %26 = vector.broadcast %25 : vector<1x8xf32> to vector<8x8xf32>
    %27 = arith.cmpf ogt, %16, %26 : vector<8x8xf32>
    %cst_10 = arith.constant dense<true> : vector<8x8xi1>
    %28 = arith.xori %24, %cst_10 : vector<8x8xi1>
    %29 = arith.andi %27, %28 : vector<8x8xi1>
    %c0_11 = arith.constant 0 : index
    %c0_12 = arith.constant 0 : index
    %30 = vector.load %arg9[%c0_11, %c0_12] : memref<1x8xi32, #tpu.memory_space<vmem>>, vector<1x8xi32>
    %31 = arith.extui %29 : vector<8x8xi1> to vector<8x8xi32>
    %cst_13 = arith.constant dense<0> : vector<8xi32>
    %32 = vector.multi_reduction <add>, %31, %cst_13 [0] : vector<8x8xi32> to vector<8xi32>
    %33 = vector.shape_cast %32 : vector<8xi32> to vector<1x8xi32>
    %34 = arith.addi %30, %33 : vector<1x8xi32>
    %c0_14 = arith.constant 0 : index
    %c0_15 = arith.constant 0 : index
    %35 = vector.load %arg9[%c0_14, %c0_15] : memref<1x8xi32, #tpu.memory_space<vmem>>, vector<1x8xi32>
    tpu.vector_store %arg9[%c0_14, %c0_15], %34 {strides = array<i32>} : memref<1x8xi32, #tpu.memory_space<vmem>>, vector<1x8xi32>,
    %c0_16 = arith.constant 0 : index
    %c0_17 = arith.constant 0 : index
    %36 = vector.load %arg7[%c0_16, %c0_17] : memref<1x8xf32, #tpu.memory_space<vmem>>, vector<1x8xf32>
    %cst_18 = arith.constant dense<0xFF800000> : vector<8xf32>
    %37 = vector.multi_reduction <maximumf>, %16, %cst_18 [0] : vector<8x8xf32> to vector<8xf32>
    %38 = vector.shape_cast %37 : vector<8xf32> to vector<1x8xf32>
    %39 = arith.maximumf %36, %38 : vector<1x8xf32>
    %c0_19 = arith.constant 0 : index
    %c0_20 = arith.constant 0 : index
    %40 = vector.load %arg8[%c0_19, %c0_20] : memref<1x8xf32, #tpu.memory_space<vmem>>, vector<1x8xf32>
    %41 = arith.subf %36, %39 : vector<1x8xf32>
    %42 = math.exp %41 : vector<1x8xf32>
    %43 = arith.mulf %40, %42 : vector<1x8xf32>
    %44 = vector.broadcast %39 : vector<1x8xf32> to vector<8x8xf32>
    %45 = arith.subf %16, %44 : vector<8x8xf32>
    %46 = math.exp %45 : vector<8x8xf32>
    %cst_21 = arith.constant dense<0.000000e+00> : vector<8xf32>
    %47 = vector.multi_reduction <add>, %46, %cst_21 [0] : vector<8x8xf32> to vector<8xf32>
    %48 = vector.shape_cast %47 : vector<8xf32> to vector<1x8xf32>
    %49 = arith.addf %43, %48 : vector<1x8xf32>
    %c0_22 = arith.constant 0 : index
    %c0_23 = arith.constant 0 : index
    %50 = vector.load %arg8[%c0_22, %c0_23] : memref<1x8xf32, #tpu.memory_space<vmem>>, vector<1x8xf32>
    tpu.vector_store %arg8[%c0_22, %c0_23], %49 {strides = array<i32>} : memref<1x8xf32, #tpu.memory_space<vmem>>, vector<1x8xf32>,
    %c0_24 = arith.constant 0 : index
    %c0_25 = arith.constant 0 : index
    %51 = vector.load %arg7[%c0_24, %c0_25] : memref<1x8xf32, #tpu.memory_space<vmem>>, vector<1x8xf32>
    tpu.vector_store %arg7[%c0_24, %c0_25], %39 {strides = array<i32>} : memref<1x8xf32, #tpu.memory_space<vmem>>, vector<1x8xf32>,
    %c0_i32_26 = arith.constant 0 : i32
    %52 = arith.cmpi eq, %arg1, %c0_i32_26 : i32
    %53 = arith.extui %52 : i1 to i32
    %c0_i32_27 = arith.constant 0 : i32
    %54 = arith.cmpi ne, %53, %c0_i32_27 : i32
    scf.if %54 {
      %c0_28 = arith.constant 0 : index
      %c0_29 = arith.constant 0 : index
      %55 = vector.load %arg9[%c0_28, %c0_29] : memref<1x8xi32, #tpu.memory_space<vmem>>, vector<1x8xi32>
      %c0_30 = arith.constant 0 : index
      %c0_31 = arith.constant 0 : index
      %56 = vector.load %arg5[%c0_30, %c0_31] : memref<1x8xi32, #tpu.memory_space<vmem>>, vector<1x8xi32>
      tpu.vector_store %arg5[%c0_30, %c0_31], %55 {strides = array<i32>} : memref<1x8xi32, #tpu.memory_space<vmem>>, vector<1x8xi32>,
      %c0_32 = arith.constant 0 : index
      %c0_33 = arith.constant 0 : index
      %57 = vector.load %arg7[%c0_32, %c0_33] : memref<1x8xf32, #tpu.memory_space<vmem>>, vector<1x8xf32>
      %c0_34 = arith.constant 0 : index
      %c0_35 = arith.constant 0 : index
      %58 = vector.load %arg8[%c0_34, %c0_35] : memref<1x8xf32, #tpu.memory_space<vmem>>, vector<1x8xf32>
      %59 = math.log %58 : vector<1x8xf32>
      %60 = arith.addf %57, %59 : vector<1x8xf32>
      %61 = arith.subf %60, %25 : vector<1x8xf32>
      %c0_36 = arith.constant 0 : index
      %c0_37 = arith.constant 0 : index
      %62 = vector.load %arg6[%c0_36, %c0_37] : memref<1x8xf32, #tpu.memory_space<vmem>>, vector<1x8xf32>
      tpu.vector_store %arg6[%c0_36, %c0_37], %61 {strides = array<i32>} : memref<1x8xf32, #tpu.memory_space<vmem>>, vector<1x8xf32>,
    } else {
    }
    return
  }
  func.func @transform_0(%arg0: i32, %arg1: i32) -> (i32, i32) {
    %c0_i32 = arith.constant 0 : i32
    %c0_i32_0 = arith.constant 0 : i32
    return %arg0, %c0_i32 : i32, i32
  }
  func.func @transform_1(%arg0: i32, %arg1: i32) -> (i32, i32) {
    %c0_i32 = arith.constant 0 : i32
    %c0_i32_0 = arith.constant 0 : i32
    return %arg0, %c0_i32 : i32, i32
  }
  func.func @transform_2(%arg0: i32, %arg1: i32) -> (i32, i32) {
    %c0_i32 = arith.constant 0 : i32
    %c0_i32_0 = arith.constant 0 : i32
    return %arg1, %c0_i32 : i32, i32
  }
  func.func @transform_3(%arg0: i32, %arg1: i32) -> (i32, i32) {
    %c0_i32 = arith.constant 0 : i32
    %c0_i32_0 = arith.constant 0 : i32
    return %arg0, %c0_i32 : i32, i32
  }
  func.func @transform_4(%arg0: i32, %arg1: i32) -> (i32, i32) {
    %c0_i32 = arith.constant 0 : i32
    %c0_i32_0 = arith.constant 0 : i32
    return %arg0, %c0_i32 : i32, i32
  }
}

module attributes {stable_mosaic.version = 11 : i64} {
  func.func @_nce_kernel(%arg0: i32, %arg1: i32, %arg2: memref<1x8xf32, #tpu.memory_space<vmem>>, %arg3: memref<8x128xf32, #tpu.memory_space<vmem>>, %arg4: memref<8x128xf32, #tpu.memory_space<vmem>>, %arg5: memref<1x8xi32, #tpu.memory_space<vmem>>, %arg6: memref<1x8xf32, #tpu.memory_space<vmem>>, %arg7: memref<1x8xf32, #tpu.memory_space<vmem>>, %arg8: memref<1x8xf32, #tpu.memory_space<vmem>>, %arg9: memref<1x8xi32, #tpu.memory_space<vmem>>) attributes {dimension_semantics = [#tpu.dimension_semantics<parallel>, #tpu.dimension_semantics<arbitrary>], iteration_bounds = array<i64: 1, 1>, scalar_prefetch = 0 : i64, scratch_operands = 3 : i64, tpu.core_type = #tpu.core_type<tc>, window_params = [{transform_indices = @transform_0, window_bounds = array<i64: 1, 8>}, {transform_indices = @transform_1, window_bounds = array<i64: 8, 128>}, {transform_indices = @transform_2, window_bounds = array<i64: 8, 128>}, {transform_indices = @transform_3, window_bounds = array<i64: 1, 8>}, {transform_indices = @transform_4, window_bounds = array<i64: 1, 8>}]} {
    %c0_i32 = arith.constant 0 : i32
    %0 = arith.cmpi eq, %arg1, %c0_i32 : i32
    %1 = arith.extui %0 : i1 to i32
    %c0_i32_0 = arith.constant 0 : i32
    %2 = arith.cmpi ne, %1, %c0_i32_0 : i32
    scf.if %2 {
      %cst_28 = arith.constant 0xFF800000 : f32
      %55 = vector.broadcast %cst_28 : f32 to vector<1x8xf32>
      %c0_29 = arith.constant 0 : index
      %c0_30 = arith.constant 0 : index
      %56 = vector.load %arg7[%c0_29, %c0_30] : memref<1x8xf32, #tpu.memory_space<vmem>>, vector<1x8xf32>
      tpu.vector_store %arg7[%c0_29, %c0_30], %55 {strides = array<i32>} : memref<1x8xf32, #tpu.memory_space<vmem>>, vector<1x8xf32>,
      %cst_31 = arith.constant 0.000000e+00 : f32
      %57 = vector.broadcast %cst_31 : f32 to vector<1x8xf32>
      %c0_32 = arith.constant 0 : index
      %c0_33 = arith.constant 0 : index
      %58 = vector.load %arg8[%c0_32, %c0_33] : memref<1x8xf32, #tpu.memory_space<vmem>>, vector<1x8xf32>
      tpu.vector_store %arg8[%c0_32, %c0_33], %57 {strides = array<i32>} : memref<1x8xf32, #tpu.memory_space<vmem>>, vector<1x8xf32>,
      %c0_i32_34 = arith.constant 0 : i32
      %59 = vector.broadcast %c0_i32_34 : i32 to vector<1x8xi32>
      %c0_35 = arith.constant 0 : index
      %c0_36 = arith.constant 0 : index
      %60 = vector.load %arg9[%c0_35, %c0_36] : memref<1x8xi32, #tpu.memory_space<vmem>>, vector<1x8xi32>
      tpu.vector_store %arg9[%c0_35, %c0_36], %59 {strides = array<i32>} : memref<1x8xi32, #tpu.memory_space<vmem>>, vector<1x8xi32>,
    } else {
    }
    %c0 = arith.constant 0 : index
    %c0_1 = arith.constant 0 : index
    %3 = vector.load %arg4[%c0, %c0_1] : memref<8x128xf32, #tpu.memory_space<vmem>>, vector<8x128xf32>
    %c0_2 = arith.constant 0 : index
    %c0_3 = arith.constant 0 : index
    %4 = vector.load %arg3[%c0_2, %c0_3] : memref<8x128xf32, #tpu.memory_space<vmem>>, vector<8x128xf32>
    %cst = arith.constant dense<0.000000e+00> : vector<8x8xf32>
    %5 = tpu.matmul %3, %4, %cst {dimension_numbers = #tpu.dot_dimension_numbers<[1], [1], [0], [0], [0, 0, 1, 0], [], []>} : vector<8x128xf32>, vector<8x128xf32>, vector<8x8xf32> -> vector<8x8xf32>
    %c8_i32 = arith.constant 8 : i32
    %6 = arith.muli %arg0, %c8_i32 : i32
    %c8_i32_4 = arith.constant 8 : i32
    %7 = arith.muli %arg1, %c8_i32_4 : i32
    %8 = tpu.iota {dimensions = array<i32: 0>} : vector<8x8xi32>
    %9 = vector.broadcast %7 : i32 to vector<8x8xi32>
    %10 = arith.addi %9, %8 : vector<8x8xi32>
    %11 = tpu.iota {dimensions = array<i32: 1>} : vector<8x8xi32>
    %12 = vector.broadcast %6 : i32 to vector<8x8xi32>
    %13 = arith.addi %12, %11 : vector<8x8xi32>
    %14 = arith.cmpi eq, %10, %13 : vector<8x8xi32>
    %cst_5 = arith.constant -1.125000e+17 : f32
    %15 = vector.broadcast %cst_5 : f32 to vector<8x8xf32>
    %16 = arith.select %14, %15, %5 : vector<8x8xi1>, vector<8x8xf32>
    %c4_i32 = arith.constant 4 : i32
    %17 = vector.broadcast %c4_i32 : i32 to vector<8x8xi32>
    %18 = arith.addi %13, %17 : vector<8x8xi32>
    %c8_i32_6 = arith.constant 8 : i32
    %19 = vector.broadcast %c8_i32_6 : i32 to vector<8x8xi32>
    %20 = arith.cmpi sge, %18, %19 : vector<8x8xi32>
    %c8_i32_7 = arith.constant 8 : i32
    %21 = vector.broadcast %c8_i32_7 : i32 to vector<8x8xi32>
    %22 = arith.subi %18, %21 : vector<8x8xi32>
    %23 = arith.select %20, %22, %18 : vector<8x8xi1>, vector<8x8xi32>
    %24 = arith.cmpi eq, %10, %23 : vector<8x8xi32>
    %c0_8 = arith.constant 0 : index
    %c0_9 = arith.constant 0 : index
    %25 = vector.load %arg2[%c0_8, %c0_9] : memref<1x8xf32, #tpu.memory_space<vmem>>, vector<1x8xf32>
    %26 = vector.broadcast %25 : vector<1x8xf32> to vector<8x8xf32>
    %27 = arith.cmpf ogt, %16, %26 : vector<8x8xf32>
    %cst_10 = arith.constant dense<true> : vector<8x8xi1>
    %28 = arith.xori %24, %cst_10 : vector<8x8xi1>
    %29 = arith.andi %27, %28 : vector<8x8xi1>
    %c0_11 = arith.constant 0 : index
    %c0_12 = arith.constant 0 : index
    %30 = vector.load %arg9[%c0_11, %c0_12] : memref<1x8xi32, #tpu.memory_space<vmem>>, vector<1x8xi32>
    %31 = arith.extui %29 : vector<8x8xi1> to vector<8x8xi32>
    %cst_13 = arith.constant dense<0> : vector<8xi32>
    %32 = vector.multi_reduction <add>, %31, %cst_13 [0] : vector<8x8xi32> to vector<8xi32>
    %33 = vector.shape_cast %32 : vector<8xi32> to vector<1x8xi32>
    %34 = arith.addi %30, %33 : vector<1x8xi32>
    %c0_14 = arith.constant 0 : index
    %c0_15 = arith.constant 0 : index
    %35 = vector.load %arg9[%c0_14, %c0_15] : memref<1x8xi32, #tpu.memory_space<vmem>>, vector<1x8xi32>
    tpu.vector_store %arg9[%c0_14, %c0_15], %34 {strides = array<i32>} : memref<1x8xi32, #tpu.memory_space<vmem>>, vector<1x8xi32>,
    %c0_16 = arith.constant 0 : index
    %c0_17 = arith.constant 0 : index
    %36 = vector.load %arg7[%c0_16, %c0_17] : memref<1x8xf32, #tpu.memory_space<vmem>>, vector<1x8xf32>
    %cst_18 = arith.constant dense<0xFF800000> : vector<8xf32>
    %37 = vector.multi_reduction <maximumf>, %16, %cst_18 [0] : vector<8x8xf32> to vector<8xf32>
    %38 = vector.shape_cast %37 : vector<8xf32> to vector<1x8xf32>
    %39 = arith.maximumf %36, %38 : vector<1x8xf32>
    %c0_19 = arith.constant 0 : index
    %c0_20 = arith.constant 0 : index
    %40 = vector.load %arg8[%c0_19, %c0_20] : memref<1x8xf32, #tpu.memory_space<vmem>>, vector<1x8xf32>
    %41 = arith.subf %36, %39 : vector<1x8xf32>
    %42 = math.exp %41 : vector<1x8xf32>
    %43 = arith.mulf %40, %42 : vector<1x8xf32>
    %44 = vector.broadcast %39 : vector<1x8xf32> to vector<8x8xf32>
    %45 = arith.subf %16, %44 : vector<8x8xf32>
    %46 = math.exp %45 : vector<8x8xf32>
    %cst_21 = arith.constant dense<0.000000e+00> : vector<8xf32>
    %47 = vector.multi_reduction <add>, %46, %cst_21 [0] : vector<8x8xf32> to vector<8xf32>
    %48 = vector.shape_cast %47 : vector<8xf32> to vector<1x8xf32>
    %49 = arith.addf %43, %48 : vector<1x8xf32>
    %c0_22 = arith.constant 0 : index
    %c0_23 = arith.constant 0 : index
    %50 = vector.load %arg8[%c0_22, %c0_23] : memref<1x8xf32, #tpu.memory_space<vmem>>, vector<1x8xf32>
    tpu.vector_store %arg8[%c0_22, %c0_23], %49 {strides = array<i32>} : memref<1x8xf32, #tpu.memory_space<vmem>>, vector<1x8xf32>,
    %c0_24 = arith.constant 0 : index
    %c0_25 = arith.constant 0 : index
    %51 = vector.load %arg7[%c0_24, %c0_25] : memref<1x8xf32, #tpu.memory_space<vmem>>, vector<1x8xf32>
    tpu.vector_store %arg7[%c0_24, %c0_25], %39 {strides = array<i32>} : memref<1x8xf32, #tpu.memory_space<vmem>>, vector<1x8xf32>,
    %c0_i32_26 = arith.constant 0 : i32
    %52 = arith.cmpi eq, %arg1, %c0_i32_26 : i32
    %53 = arith.extui %52 : i1 to i32
    %c0_i32_27 = arith.constant 0 : i32
    %54 = arith.cmpi ne, %53, %c0_i32_27 : i32
    scf.if %54 {
      %c0_28 = arith.constant 0 : index
      %c0_29 = arith.constant 0 : index
      %55 = vector.load %arg9[%c0_28, %c0_29] : memref<1x8xi32, #tpu.memory_space<vmem>>, vector<1x8xi32>
      %c0_30 = arith.constant 0 : index
      %c0_31 = arith.constant 0 : index
      %56 = vector.load %arg5[%c0_30, %c0_31] : memref<1x8xi32, #tpu.memory_space<vmem>>, vector<1x8xi32>
      tpu.vector_store %arg5[%c0_30, %c0_31], %55 {strides = array<i32>} : memref<1x8xi32, #tpu.memory_space<vmem>>, vector<1x8xi32>,
      %c0_32 = arith.constant 0 : index
      %c0_33 = arith.constant 0 : index
      %57 = vector.load %arg7[%c0_32, %c0_33] : memref<1x8xf32, #tpu.memory_space<vmem>>, vector<1x8xf32>
      %c0_34 = arith.constant 0 : index
      %c0_35 = arith.constant 0 : index
      %58 = vector.load %arg8[%c0_34, %c0_35] : memref<1x8xf32, #tpu.memory_space<vmem>>, vector<1x8xf32>
      %59 = math.log %58 : vector<1x8xf32>
      %60 = arith.addf %57, %59 : vector<1x8xf32>
      %61 = arith.subf %60, %25 : vector<1x8xf32>
      %c0_36 = arith.constant 0 : index
      %c0_37 = arith.constant 0 : index
      %62 = vector.load %arg6[%c0_36, %c0_37] : memref<1x8xf32, #tpu.memory_space<vmem>>, vector<1x8xf32>
      tpu.vector_store %arg6[%c0_36, %c0_37], %61 {strides = array<i32>} : memref<1x8xf32, #tpu.memory_space<vmem>>, vector<1x8xf32>,
    } else {
    }
    return
  }
  func.func @transform_0(%arg0: i32, %arg1: i32) -> (i32, i32) {
    %c0_i32 = arith.constant 0 : i32
    %c0_i32_0 = arith.constant 0 : i32
    return %arg0, %c0_i32 : i32, i32
  }
  func.func @transform_1(%arg0: i32, %arg1: i32) -> (i32, i32) {
    %c0_i32 = arith.constant 0 : i32
    %c0_i32_0 = arith.constant 0 : i32
    return %arg0, %c0_i32 : i32, i32
  }
  func.func @transform_2(%arg0: i32, %arg1: i32) -> (i32, i32) {
    %c0_i32 = arith.constant 0 : i32
    %c0_i32_0 = arith.constant 0 : i32
    return %arg1, %c0_i32 : i32, i32
  }
  func.func @transform_3(%arg0: i32, %arg1: i32) -> (i32, i32) {
    %c0_i32 = arith.constant 0 : i32
    %c0_i32_0 = arith.constant 0 : i32
    return %arg0, %c0_i32 : i32, i32
  }
  func.func @transform_4(%arg0: i32, %arg1: i32) -> (i32, i32) {
    %c0_i32 = arith.constant 0 : i32
    %c0_i32_0 = arith.constant 0 : i32
    return %arg0, %c0_i32 : i32, i32
  }
}

</mosaic_0001>

<llo_original>
// kernel: tpu_custom_call.1
$region0: #{tpu_custom_call.1}
  #allocation0 [shape = 'u32[]', space=smem, size = 0x4, offset = 0x4, fixed_abs, tag = 'smem constant byte address 0x4 - core index']
  #allocation1 [shape = 'u32[144,128]{1,0:T(1,128)}', space=vmem, size = 0x12000, scoped, tag = 'internal scratch']
  #allocation2 [shape = 'f32[1,8]{1,0:T(1,128)}', space=vmem, size = 0x200, scoped, tag = 'scratch operand']
  #allocation3 [shape = 'f32[1,8]{1,0:T(1,128)}', space=vmem, size = 0x200, scoped, tag = 'scratch operand']
  #allocation4 [shape = 's32[1,8]{1,0:T(1,128)}', space=vmem, size = 0x200, scoped, tag = 'scratch operand']
  %s0 = inlined_call_operand.hbm [shape: f32[1,8], index: 0, kind: input, shape index: {}]
  %s1 = inlined_call_operand.hbm [shape: f32[8,128], index: 1, kind: input, shape index: {}]
  %s2 = inlined_call_operand.hbm [shape: f32[8,128], index: 2, kind: input, shape index: {}]
  %s3 = inlined_call_operand.hbm [shape: s32[1,8], index: 3, kind: output, shape index: {0}]
  %s4 = inlined_call_operand.hbm [shape: f32[1,8], index: 4, kind: output, shape index: {1}]
  %5 = xla_tuple %s3, %s4
  %s6 = sld [smem:[#allocation0]]
  $region50: #{tpu_custom_call.1} parent=0
    _
  %s8 = ssub.s32 1, %s6
  %s9 = scalar_select 0, %s8, %s6
  $region1: #{tpu_custom_call.1} parent=0
    #allocation5 [shape = 'u8[512]{0}', space=vmem, size = 0x400, scoped, tag = 'input window, operand 0, single buffered']
    #allocation6 [shape = 's32[1]{0}', space=sflag, size = 0x4, scoped, tag = 'scoped memory for tpu_custom_call.1']
    #allocation7 [shape = 's32[1]{0}', space=sflag, size = 0x4, scoped, tag = 'scoped memory for tpu_custom_call.1']
    #allocation8 [shape = 'u8[4096]{0}', space=vmem, size = 0x1000, scoped, tag = 'input window, operand 1, single buffered']
    #allocation9 [shape = 's32[1]{0}', space=sflag, size = 0x4, scoped, tag = 'scoped memory for tpu_custom_call.1']
    #allocation10 [shape = 'u8[4096]{0}', space=vmem, size = 0x1000, scoped, tag = 'input window, operand 2, single buffered']
    #allocation11 [shape = 'u8[512]{0}', space=vmem, size = 0x400, scoped, tag = 'output window, operand 0, single buffered']
    #allocation12 [shape = 'u8[512]{0}', space=vmem, size = 0x400, scoped, tag = 'output window, operand 1, single buffered']
    #allocation13 [shape = 's32[1]{0}', space=sflag, size = 0x4, scoped, tag = 'scoped memory for tpu_custom_call.1']
    %10 = vsyncpa [#allocation6], 0
    %11 = vsyncpa [#allocation9], 0
    %12 = vsyncpa [#allocation7], 0
    %13 = vsyncpa [#allocation13], 0
    // Predicated region
    $region2: #{tpu_custom_call.1} parent=1 // pred_check
      _
    $region3: #{tpu_custom_call.1} parent=1 // pred_check_branch
      %15 = sbr.rel (0) target = $region5
    $region4: #{tpu_custom_call.1} parent=1 // pred_region
      %s17 = ssub.s32 16, 16
      %18 = vsyncadd [#allocation6], %s17
      %s20 = sshll.u32 [#allocation5], 4
      %s21 = int_to_ptr.vmem [resolvable:$true] %s20
      %23 = dma.hbm_to_vmem [thread:$0]  %s0, 16, %s21, [#allocation6]
    $region5: #{tpu_custom_call.1} parent=1 // pred_fallthru
      _
    // Predicated region
    $region6: #{tpu_custom_call.1} parent=1 // pred_check
      _
    $region7: #{tpu_custom_call.1} parent=1 // pred_check_branch
      %25 = sbr.rel (0) target = $region9
    $region8: #{tpu_custom_call.1} parent=1 // pred_region
      %s27 = ssub.s32 128, 128
      %28 = vsyncadd [#allocation9], %s27
      %s30 = sshll.u32 [#allocation8], 4
      %s31 = int_to_ptr.vmem [resolvable:$true] %s30
      %33 = dma.hbm_to_vmem [thread:$0]  %s1, 128, %s31, [#allocation9]
    $region9: #{tpu_custom_call.1} parent=1 // pred_fallthru
      _
    // Predicated region
    $region10: #{tpu_custom_call.1} parent=1 // pred_check
      _
    $region11: #{tpu_custom_call.1} parent=1 // pred_check_branch
      %35 = sbr.rel (0) target = $region13
    $region12: #{tpu_custom_call.1} parent=1 // pred_region
      %s37 = ssub.s32 128, 128
      %38 = vsyncadd [#allocation9], %s37
      %s40 = sshll.u32 [#allocation10], 4
      %s41 = int_to_ptr.vmem [resolvable:$true] %s40
      %43 = dma.hbm_to_vmem [thread:$0]  %s2, 128, %s41, [#allocation9]
    $region13: #{tpu_custom_call.1} parent=1 // pred_fallthru
      _
    // Predicated region
    $region14: #{tpu_custom_call.1} parent=1 // pred_check
      _
    $region15: #{tpu_custom_call.1} parent=1 // pred_check_branch
      %45 = sbr.rel (0) target = $region17
    $region16: #{tpu_custom_call.1} parent=1 // pred_region
      %46 = dma.done [#allocation6], 16
    $region17: #{tpu_custom_call.1} parent=1 // pred_fallthru
      _
    // Predicated region
    $region18: #{tpu_custom_call.1} parent=1 // pred_check
      _
    $region19: #{tpu_custom_call.1} parent=1 // pred_check_branch
      %48 = sbr.rel (0) target = $region21
    $region20: #{tpu_custom_call.1} parent=1 // pred_region
      %49 = dma.done [#allocation9], 128
    $region21: #{tpu_custom_call.1} parent=1 // pred_fallthru
      _
    // Predicated region
    $region22: #{tpu_custom_call.1} parent=1 // pred_check
      _
    $region23: #{tpu_custom_call.1} parent=1 // pred_check_branch
      %51 = sbr.rel (0) target = $region25
    $region24: #{tpu_custom_call.1} parent=1 // pred_region
      %52 = dma.done [#allocation9], 128
    $region25: #{tpu_custom_call.1} parent=1 // pred_fallthru
      _
    %p53 = scmp.eq.s32.totalorder 0, 0
    // Predicated region
    $region26: #{tpu_custom_call.1} parent=1 // pred_check
      %p54 = pneg %p53
    $region27: #{tpu_custom_call.1} parent=1 // pred_check_branch
      %56 = sbr.rel (%p54) target = $region29
    $region28: #{tpu_custom_call.1} parent=1 // pred_region
      %vm57 = vcmask 57344
      %58 = vst.msk [vmem:[#allocation2] sm:$0x1] %vm57, -inf
      %59 = vst.msk [vmem:[#allocation3] sm:$0x1] %vm57, 0.0
      %60 = vst.msk [vmem:[#allocation4] sm:$0x1] %vm57, 0
    $region29: #{tpu_custom_call.1} parent=1 // pred_fallthru
      _
    %v61 = vld [vmem:[#allocation10] sm:$0xff]
    %v62 = vld [vmem:[#allocation8] sm:$0xff]
    %63 = vmatprep.subr.mxu0 0.0
    %64 = vmatpush1.xpose.msra.mxu0 0.0
    %65 = vmatprep.subr.mxu0 0.0
    %66 = vmatpush1.xpose.msra.mxu0 0.0
    %67 = vmatprep.subr.mxu0 0.0
    %68 = vmatpush1.xpose.msra.mxu0 0.0
    %69 = vmatprep.subr.mxu0 0.0
    %70 = vmatpush1.xpose.msra.mxu0 0.0
    %71 = vmatprep.subr.mxu0 0.0
    %72 = vmatpush1.xpose.msra.mxu0 0.0
    %73 = vmatprep.subr.mxu0 0.0
    %74 = vmatpush1.xpose.msra.mxu0 0.0
    %75 = vmatprep.subr.mxu0 0.0
    %76 = vmatpush1.xpose.msra.mxu0 0.0
    %77 = vmatprep.subr.mxu0 0.0
    %78 = vmatpush1.xpose.msra.mxu0 0.0
    %79 = vmatprep.subr.mxu0 0.0
    %80 = vmatpush1.xpose.msra.mxu0 0.0
    %81 = vmatprep.subr.mxu0 0.0
    %82 = vmatpush1.xpose.msra.mxu0 0.0
    %83 = vmatprep.subr.mxu0 0.0
    %84 = vmatpush1.xpose.msra.mxu0 0.0
    %85 = vmatprep.subr.mxu0 0.0
    %86 = vmatpush1.xpose.msra.mxu0 0.0
    %87 = vmatprep.subr.mxu0 0.0
    %88 = vmatpush1.xpose.msra.mxu0 0.0
    %89 = vmatprep.subr.mxu0 0.0
    %90 = vmatpush1.xpose.msra.mxu0 0.0
    %91 = vmatprep.subr.mxu0 0.0
    %92 = vmatpush1.xpose.msra.mxu0 0.0
    %93 = vmatprep.subr.mxu0 0.0
    %94 = vmatpush1.xpose.msra.mxu0 %v62
    %95 = vmatprep.subr.mxu0 0.0
    %96 = vmatpush2.xpose.msra.mxu0 0.0
    %97 = vmatprep.subr.mxu0 0.0
    %98 = vmatpush2.xpose.msra.mxu0 0.0
    %99 = vmatprep.subr.mxu0 0.0
    %100 = vmatpush2.xpose.msra.mxu0 0.0
    %101 = vmatprep.subr.mxu0 0.0
    %102 = vmatpush2.xpose.msra.mxu0 0.0
    %103 = vmatprep.subr.mxu0 0.0
    %104 = vmatpush2.xpose.msra.mxu0 0.0
    %105 = vmatprep.subr.mxu0 0.0
    %106 = vmatpush2.xpose.msra.mxu0 0.0
    %107 = vmatprep.subr.mxu0 0.0
    %108 = vmatpush2.xpose.msra.mxu0 0.0
    %109 = vmatprep.subr.mxu0 0.0
    %110 = vmatpush2.xpose.msra.mxu0 0.0
    %111 = vmatprep.subr.mxu0 0.0
    %112 = vmatpush2.xpose.msra.mxu0 0.0
    %113 = vmatprep.subr.mxu0 0.0
    %114 = vmatpush2.xpose.msra.mxu0 0.0
    %115 = vmatprep.subr.mxu0 0.0
    %116 = vmatpush2.xpose.msra.mxu0 0.0
    %117 = vmatprep.subr.mxu0 0.0
    %118 = vmatpush2.xpose.msra.mxu0 0.0
    %119 = vmatprep.subr.mxu0 0.0
    %120 = vmatpush2.xpose.msra.mxu0 0.0
    %121 = vmatprep.subr.mxu0 0.0
    %122 = vmatpush2.xpose.msra.mxu0 0.0
    %123 = vmatprep.subr.mxu0 0.0
    %124 = vmatpush2.xpose.msra.mxu0 0.0
    %125 = vmatprep.subr.mxu0 0.0
    %126 = vmatpush2.xpose.msra.mxu0 0.0
    %127 = vmatprep.mubr.f32.mxu0 0.0
    %128 = vmatmul.mubr.f32.gmra.mxu0 %v61
    %v129 = vpop.f32.mrf.mxu0
    %v130 = vadd.f32 0.0, %v129
    %v131 = vpop.f32.mrf.mxu0
    %132 = vdwg.mxu0
    %s133 = smul.u32 0, 8
    %s134 = smul.u32 0, 8
    %v135 = vlaneseq
    %v136 = vshrl.u32 %v135, 7
    %v137 = vstv %s134
    %v138 = vadd.s32 %v137, %v136
    %v139 = vlaneseq
    %v140 = vand.u32 %v139, 127
    %v141 = vstv %s133
    %v142 = vadd.s32 %v141, %v140
    %vm143 = vcmp.eq.s32.totalorder %v138, %v142
    %v144 = vsel %vm143, -1.125e+17, %v130
    %v145 = vadd.s32 %v142, 4
    %vm146 = vcmp.ge.s32.totalorder %v145, 8
    %v147 = vsub.s32 %v145, 8
    %v148 = vsel %vm146, %v147, %v145
    %vm149 = vcmp.eq.s32.totalorder %v138, %v148
    %v150 = vld [vmem:[#allocation5] sm:$0x1]
    %v152 = vlaneseq
    %v153 = vshrl.u32 %v152, 7
    %v154 = vsub.s32 0, %v153
    %v155 = vrot.slane %v150, %v154
    %vm157 = vcmp.gt.f32.partialorder %v144, %v155
    %vm158 = vmxor %vm149, 1
    %vm159 = vmand %vm157, %vm158
    %v160 = vld [vmem:[#allocation4] sm:$0x1]
    %v161 = vsel %vm159, 1, 0
    %vm162 = vcmask 64512
    %v163 = vsel %vm162, %v161, 0
    %v164 = vrot.slane %v163, 4
    %v165 = vadd.s32 %v163, %v164
    %v166 = vrot.slane %v165, 2
    %v167 = vadd.s32 %v165, %v166
    %v168 = vrot.slane %v167, 1
    %v169 = vadd.s32 %v167, %v168
    %v170 = vadd.s32 %v160, %v169
    %vm171 = vcmask 57344
    %172 = vst.msk [vmem:[#allocation4] sm:$0x1] %vm171, %v170
    %v173 = vld [vmem:[#allocation2] sm:$0x1]
    %v174 = vsel %vm162, %v144, -inf
    %v175 = vrot.slane %v174, 4
    %v176 = vmax.f32 %v174, %v175
    %v177 = vrot.slane %v176, 2
    %v178 = vmax.f32 %v176, %v177
    %v179 = vrot.slane %v178, 1
    %v180 = vmax.f32 %v178, %v179
    %v181 = vmax.f32 %v173, %v180
    %v182 = vld [vmem:[#allocation3] sm:$0x1]
    %v183 = vsub.f32 %v173, %v181
    %v184 = vmul.f32 %v183, 1.442695
    %v185 = vpow.pop %v184
    %v186 = vmul.f32 %v182, %v185
    %v188 = vlaneseq
    %v189 = vshrl.u32 %v188, 7
    %v190 = vsub.s32 0, %v189
    %v191 = vrot.slane %v181, %v190
    %v193 = vsub.f32 %v144, %v191
    %v194 = vmul.f32 %v193, 1.442695
    %v195 = vpow.pop %v194
    %v196 = vsel %vm162, %v195, 0.0
    %v197 = vrot.slane %v196, 4
    %v198 = vadd.f32 %v196, %v197
    %v199 = vrot.slane %v198, 2
    %v200 = vadd.f32 %v198, %v199
    %v201 = vrot.slane %v200, 1
    %v202 = vadd.f32 %v200, %v201
    %v203 = vadd.f32 %v186, %v202
    %204 = vst.msk [vmem:[#allocation3] sm:$0x1] %vm171, %v203
    %205 = vst.msk [vmem:[#allocation2] sm:$0x1] %vm171, %v181
    // Predicated region
    $region30: #{tpu_custom_call.1} parent=1 // pred_check
      %p206 = pneg %p53
    $region31: #{tpu_custom_call.1} parent=1 // pred_check_branch
      %208 = sbr.rel (%p206) target = $region33
    $region32: #{tpu_custom_call.1} parent=1 // pred_region
      %v209 = vld [vmem:[#allocation4] sm:$0x1]
      %210 = vst.msk [vmem:[#allocation11] sm:$0x1] %vm171, %v209
      %v211 = vld [vmem:[#allocation2] sm:$0x1]
      %v212 = vld [vmem:[#allocation3] sm:$0x1]
      %v213 = vlog2.pop %v212
      %v214 = vmul.f32 %v213, 0.6931472
      %v215 = vadd.f32 %v211, %v214
      %v216 = vsub.f32 %v215, %v150
      %217 = vst.msk [vmem:[#allocation12] sm:$0x1] %vm171, %v216
    $region33: #{tpu_custom_call.1} parent=1 // pred_fallthru
      _
    // Predicated region
    $region34: #{tpu_custom_call.1} parent=1 // pred_check
      _
    $region35: #{tpu_custom_call.1} parent=1 // pred_check_branch
      %219 = sbr.rel (0) target = $region37
    $region36: #{tpu_custom_call.1} parent=1 // pred_region
      %s221 = ssub.s32 16, 16
      %222 = vsyncadd [#allocation7], %s221
      %s224 = sshll.u32 [#allocation11], 4
      %s225 = int_to_ptr.vmem [resolvable:$true] %s224
      %227 = dma.vmem_to_hbm [thread:$0]  %s225, 16, %s3, [#allocation7]
    $region37: #{tpu_custom_call.1} parent=1 // pred_fallthru
      _
    // Predicated region
    $region38: #{tpu_custom_call.1} parent=1 // pred_check
      _
    $region39: #{tpu_custom_call.1} parent=1 // pred_check_branch
      %229 = sbr.rel (0) target = $region41
    $region40: #{tpu_custom_call.1} parent=1 // pred_region
      %s231 = ssub.s32 16, 16
      %232 = vsyncadd [#allocation13], %s231
      %s234 = sshll.u32 [#allocation12], 4
      %s235 = int_to_ptr.vmem [resolvable:$true] %s234
      %237 = dma.vmem_to_hbm [thread:$0]  %s235, 16, %s4, [#allocation13]
    $region41: #{tpu_custom_call.1} parent=1 // pred_fallthru
      _
    // Predicated region
    $region42: #{tpu_custom_call.1} parent=1 // pred_check
      _
    $region43: #{tpu_custom_call.1} parent=1 // pred_check_branch
      %239 = sbr.rel (0) target = $region45
    $region44: #{tpu_custom_call.1} parent=1 // pred_region
      %240 = dma.done [#allocation7], 16
    $region45: #{tpu_custom_call.1} parent=1 // pred_fallthru
      _
    // Predicated region
    $region46: #{tpu_custom_call.1} parent=1 // pred_check
      _
    $region47: #{tpu_custom_call.1} parent=1 // pred_check_branch
      %242 = sbr.rel (0) target = $region49
    $region48: #{tpu_custom_call.1} parent=1 // pred_region
      %243 = dma.done [#allocation13], 16
    $region49: #{tpu_custom_call.1} parent=1 // pred_fallthru
      _
    %244 = vsyncpa [#allocation6], 1
    %245 = vsyncpa [#allocation9], 1
    %246 = vsyncpa [#allocation7], 1
    %247 = vsyncpa [#allocation13], 1

// kernel: tpu_custom_call.1
$region0: #{tpu_custom_call.1}
  #allocation0 [shape = 'u32[]', space=smem, size = 0x4, offset = 0x4, fixed_abs, tag = 'smem constant byte address 0x4 - core index']
  #allocation1 [shape = 'u32[144,128]{1,0:T(1,128)}', space=vmem, size = 0x12000, scoped, tag = 'internal scratch']
  #allocation2 [shape = 'f32[1,8]{1,0:T(1,128)}', space=vmem, size = 0x200, scoped, tag = 'scratch operand']
  #allocation3 [shape = 'f32[1,8]{1,0:T(1,128)}', space=vmem, size = 0x200, scoped, tag = 'scratch operand']
  #allocation4 [shape = 's32[1,8]{1,0:T(1,128)}', space=vmem, size = 0x200, scoped, tag = 'scratch operand']
  %s0 = inlined_call_operand.hbm [shape: f32[1,8], index: 0, kind: input, shape index: {}]
  %s1 = inlined_call_operand.hbm [shape: f32[8,128], index: 1, kind: input, shape index: {}]
  %s2 = inlined_call_operand.hbm [shape: f32[8,128], index: 2, kind: input, shape index: {}]
  %s3 = inlined_call_operand.hbm [shape: s32[1,8], index: 3, kind: output, shape index: {0}]
  %s4 = inlined_call_operand.hbm [shape: f32[1,8], index: 4, kind: output, shape index: {1}]
  %5 = xla_tuple %s3, %s4
  %s6 = sld [smem:[#allocation0]]
  $region50: #{tpu_custom_call.1} parent=0
    _
  %s8 = ssub.s32 1, %s6
  %s9 = scalar_select 0, %s8, %s6
  $region1: #{tpu_custom_call.1} parent=0
    #allocation5 [shape = 'u8[512]{0}', space=vmem, size = 0x400, scoped, tag = 'input window, operand 0, single buffered']
    #allocation6 [shape = 's32[1]{0}', space=sflag, size = 0x4, scoped, tag = 'scoped memory for tpu_custom_call.1']
    #allocation7 [shape = 's32[1]{0}', space=sflag, size = 0x4, scoped, tag = 'scoped memory for tpu_custom_call.1']
    #allocation8 [shape = 'u8[4096]{0}', space=vmem, size = 0x1000, scoped, tag = 'input window, operand 1, single buffered']
    #allocation9 [shape = 's32[1]{0}', space=sflag, size = 0x4, scoped, tag = 'scoped memory for tpu_custom_call.1']
    #allocation10 [shape = 'u8[4096]{0}', space=vmem, size = 0x1000, scoped, tag = 'input window, operand 2, single buffered']
    #allocation11 [shape = 'u8[512]{0}', space=vmem, size = 0x400, scoped, tag = 'output window, operand 0, single buffered']
    #allocation12 [shape = 'u8[512]{0}', space=vmem, size = 0x400, scoped, tag = 'output window, operand 1, single buffered']
    #allocation13 [shape = 's32[1]{0}', space=sflag, size = 0x4, scoped, tag = 'scoped memory for tpu_custom_call.1']
    %10 = vsyncpa [#allocation6], 0
    %11 = vsyncpa [#allocation9], 0
    %12 = vsyncpa [#allocation7], 0
    %13 = vsyncpa [#allocation13], 0
    // Predicated region
    $region2: #{tpu_custom_call.1} parent=1 // pred_check
      _
    $region3: #{tpu_custom_call.1} parent=1 // pred_check_branch
      %15 = sbr.rel (0) target = $region5
    $region4: #{tpu_custom_call.1} parent=1 // pred_region
      %s17 = ssub.s32 16, 16
      %18 = vsyncadd [#allocation6], %s17
      %s20 = sshll.u32 [#allocation5], 4
      %s21 = int_to_ptr.vmem [resolvable:$true] %s20
      %23 = dma.hbm_to_vmem [thread:$0]  %s0, 16, %s21, [#allocation6]
    $region5: #{tpu_custom_call.1} parent=1 // pred_fallthru
      _
    // Predicated region
    $region6: #{tpu_custom_call.1} parent=1 // pred_check
      _
    $region7: #{tpu_custom_call.1} parent=1 // pred_check_branch
      %25 = sbr.rel (0) target = $region9
    $region8: #{tpu_custom_call.1} parent=1 // pred_region
      %s27 = ssub.s32 128, 128
      %28 = vsyncadd [#allocation9], %s27
      %s30 = sshll.u32 [#allocation8], 4
      %s31 = int_to_ptr.vmem [resolvable:$true] %s30
      %33 = dma.hbm_to_vmem [thread:$0]  %s1, 128, %s31, [#allocation9]
    $region9: #{tpu_custom_call.1} parent=1 // pred_fallthru
      _
    // Predicated region
    $region10: #{tpu_custom_call.1} parent=1 // pred_check
      _
    $region11: #{tpu_custom_call.1} parent=1 // pred_check_branch
      %35 = sbr.rel (0) target = $region13
    $region12: #{tpu_custom_call.1} parent=1 // pred_region
      %s37 = ssub.s32 128, 128
      %38 = vsyncadd [#allocation9], %s37
      %s40 = sshll.u32 [#allocation10], 4
      %s41 = int_to_ptr.vmem [resolvable:$true] %s40
      %43 = dma.hbm_to_vmem [thread:$0]  %s2, 128, %s41, [#allocation9]
    $region13: #{tpu_custom_call.1} parent=1 // pred_fallthru
      _
    // Predicated region
    $region14: #{tpu_custom_call.1} parent=1 // pred_check
      _
    $region15: #{tpu_custom_call.1} parent=1 // pred_check_branch
      %45 = sbr.rel (0) target = $region17
    $region16: #{tpu_custom_call.1} parent=1 // pred_region
      %46 = dma.done [#allocation6], 16
    $region17: #{tpu_custom_call.1} parent=1 // pred_fallthru
      _
    // Predicated region
    $region18: #{tpu_custom_call.1} parent=1 // pred_check
      _
    $region19: #{tpu_custom_call.1} parent=1 // pred_check_branch
      %48 = sbr.rel (0) target = $region21
    $region20: #{tpu_custom_call.1} parent=1 // pred_region
      %49 = dma.done [#allocation9], 128
    $region21: #{tpu_custom_call.1} parent=1 // pred_fallthru
      _
    // Predicated region
    $region22: #{tpu_custom_call.1} parent=1 // pred_check
      _
    $region23: #{tpu_custom_call.1} parent=1 // pred_check_branch
      %51 = sbr.rel (0) target = $region25
    $region24: #{tpu_custom_call.1} parent=1 // pred_region
      %52 = dma.done [#allocation9], 128
    $region25: #{tpu_custom_call.1} parent=1 // pred_fallthru
      _
    %p53 = scmp.eq.s32.totalorder 0, 0
    // Predicated region
    $region26: #{tpu_custom_call.1} parent=1 // pred_check
      %p54 = pneg %p53
    $region27: #{tpu_custom_call.1} parent=1 // pred_check_branch
      %56 = sbr.rel (%p54) target = $region29
    $region28: #{tpu_custom_call.1} parent=1 // pred_region
      %vm57 = vcmask 57344
      %58 = vst.msk [vmem:[#allocation2] sm:$0x1] %vm57, -inf
      %59 = vst.msk [vmem:[#allocation3] sm:$0x1] %vm57, 0.0
      %60 = vst.msk [vmem:[#allocation4] sm:$0x1] %vm57, 0
    $region29: #{tpu_custom_call.1} parent=1 // pred_fallthru
      _
    %v61 = vld [vmem:[#allocation10] sm:$0xff]
    %v62 = vld [vmem:[#allocation8] sm:$0xff]
    %63 = vmatprep.subr.mxu0 0.0
    %64 = vmatpush1.xpose.msra.mxu0 0.0
    %65 = vmatprep.subr.mxu0 0.0
    %66 = vmatpush1.xpose.msra.mxu0 0.0
    %67 = vmatprep.subr.mxu0 0.0
    %68 = vmatpush1.xpose.msra.mxu0 0.0
    %69 = vmatprep.subr.mxu0 0.0
    %70 = vmatpush1.xpose.msra.mxu0 0.0
    %71 = vmatprep.subr.mxu0 0.0
    %72 = vmatpush1.xpose.msra.mxu0 0.0
    %73 = vmatprep.subr.mxu0 0.0
    %74 = vmatpush1.xpose.msra.mxu0 0.0
    %75 = vmatprep.subr.mxu0 0.0
    %76 = vmatpush1.xpose.msra.mxu0 0.0
    %77 = vmatprep.subr.mxu0 0.0
    %78 = vmatpush1.xpose.msra.mxu0 0.0
    %79 = vmatprep.subr.mxu0 0.0
    %80 = vmatpush1.xpose.msra.mxu0 0.0
    %81 = vmatprep.subr.mxu0 0.0
    %82 = vmatpush1.xpose.msra.mxu0 0.0
    %83 = vmatprep.subr.mxu0 0.0
    %84 = vmatpush1.xpose.msra.mxu0 0.0
    %85 = vmatprep.subr.mxu0 0.0
    %86 = vmatpush1.xpose.msra.mxu0 0.0
    %87 = vmatprep.subr.mxu0 0.0
    %88 = vmatpush1.xpose.msra.mxu0 0.0
    %89 = vmatprep.subr.mxu0 0.0
    %90 = vmatpush1.xpose.msra.mxu0 0.0
    %91 = vmatprep.subr.mxu0 0.0
    %92 = vmatpush1.xpose.msra.mxu0 0.0
    %93 = vmatprep.subr.mxu0 0.0
    %94 = vmatpush1.xpose.msra.mxu0 %v62
    %95 = vmatprep.subr.mxu0 0.0
    %96 = vmatpush2.xpose.msra.mxu0 0.0
    %97 = vmatprep.subr.mxu0 0.0
    %98 = vmatpush2.xpose.msra.mxu0 0.0
    %99 = vmatprep.subr.mxu0 0.0
    %100 = vmatpush2.xpose.msra.mxu0 0.0
    %101 = vmatprep.subr.mxu0 0.0
    %102 = vmatpush2.xpose.msra.mxu0 0.0
    %103 = vmatprep.subr.mxu0 0.0
    %104 = vmatpush2.xpose.msra.mxu0 0.0
    %105 = vmatprep.subr.mxu0 0.0
    %106 = vmatpush2.xpose.msra.mxu0 0.0
    %107 = vmatprep.subr.mxu0 0.0
    %108 = vmatpush2.xpose.msra.mxu0 0.0
    %109 = vmatprep.subr.mxu0 0.0
    %110 = vmatpush2.xpose.msra.mxu0 0.0
    %111 = vmatprep.subr.mxu0 0.0
    %112 = vmatpush2.xpose.msra.mxu0 0.0
    %113 = vmatprep.subr.mxu0 0.0
    %114 = vmatpush2.xpose.msra.mxu0 0.0
    %115 = vmatprep.subr.mxu0 0.0
    %116 = vmatpush2.xpose.msra.mxu0 0.0
    %117 = vmatprep.subr.mxu0 0.0
    %118 = vmatpush2.xpose.msra.mxu0 0.0
    %119 = vmatprep.subr.mxu0 0.0
    %120 = vmatpush2.xpose.msra.mxu0 0.0
    %121 = vmatprep.subr.mxu0 0.0
    %122 = vmatpush2.xpose.msra.mxu0 0.0
    %123 = vmatprep.subr.mxu0 0.0
    %124 = vmatpush2.xpose.msra.mxu0 0.0
    %125 = vmatprep.subr.mxu0 0.0
    %126 = vmatpush2.xpose.msra.mxu0 0.0
    %127 = vmatprep.mubr.f32.mxu0 0.0
    %128 = vmatmul.mubr.f32.gmra.mxu0 %v61
    %v129 = vpop.f32.mrf.mxu0
    %v130 = vadd.f32 0.0, %v129
    %v131 = vpop.f32.mrf.mxu0
    %132 = vdwg.mxu0
    %s133 = smul.u32 0, 8
    %s134 = smul.u32 0, 8
    %v135 = vlaneseq
    %v136 = vshrl.u32 %v135, 7
    %v137 = vstv %s134
    %v138 = vadd.s32 %v137, %v136
    %v139 = vlaneseq
    %v140 = vand.u32 %v139, 127
    %v141 = vstv %s133
    %v142 = vadd.s32 %v141, %v140
    %vm143 = vcmp.eq.s32.totalorder %v138, %v142
    %v144 = vsel %vm143, -1.125e+17, %v130
    %v145 = vadd.s32 %v142, 4
    %vm146 = vcmp.ge.s32.totalorder %v145, 8
    %v147 = vsub.s32 %v145, 8
    %v148 = vsel %vm146, %v147, %v145
    %vm149 = vcmp.eq.s32.totalorder %v138, %v148
    %v150 = vld [vmem:[#allocation5] sm:$0x1]
    %v152 = vlaneseq
    %v153 = vshrl.u32 %v152, 7
    %v154 = vsub.s32 0, %v153
    %v155 = vrot.slane %v150, %v154
    %vm157 = vcmp.gt.f32.partialorder %v144, %v155
    %vm158 = vmxor %vm149, 1
    %vm159 = vmand %vm157, %vm158
    %v160 = vld [vmem:[#allocation4] sm:$0x1]
    %v161 = vsel %vm159, 1, 0
    %vm162 = vcmask 64512
    %v163 = vsel %vm162, %v161, 0
    %v164 = vrot.slane %v163, 4
    %v165 = vadd.s32 %v163, %v164
    %v166 = vrot.slane %v165, 2
    %v167 = vadd.s32 %v165, %v166
    %v168 = vrot.slane %v167, 1
    %v169 = vadd.s32 %v167, %v168
    %v170 = vadd.s32 %v160, %v169
    %vm171 = vcmask 57344
    %172 = vst.msk [vmem:[#allocation4] sm:$0x1] %vm171, %v170
    %v173 = vld [vmem:[#allocation2] sm:$0x1]
    %v174 = vsel %vm162, %v144, -inf
    %v175 = vrot.slane %v174, 4
    %v176 = vmax.f32 %v174, %v175
    %v177 = vrot.slane %v176, 2
    %v178 = vmax.f32 %v176, %v177
    %v179 = vrot.slane %v178, 1
    %v180 = vmax.f32 %v178, %v179
    %v181 = vmax.f32 %v173, %v180
    %v182 = vld [vmem:[#allocation3] sm:$0x1]
    %v183 = vsub.f32 %v173, %v181
    %v184 = vmul.f32 %v183, 1.442695
    %v185 = vpow.pop %v184
    %v186 = vmul.f32 %v182, %v185
    %v188 = vlaneseq
    %v189 = vshrl.u32 %v188, 7
    %v190 = vsub.s32 0, %v189
    %v191 = vrot.slane %v181, %v190
    %v193 = vsub.f32 %v144, %v191
    %v194 = vmul.f32 %v193, 1.442695
    %v195 = vpow.pop %v194
    %v196 = vsel %vm162, %v195, 0.0
    %v197 = vrot.slane %v196, 4
    %v198 = vadd.f32 %v196, %v197
    %v199 = vrot.slane %v198, 2
    %v200 = vadd.f32 %v198, %v199
    %v201 = vrot.slane %v200, 1
    %v202 = vadd.f32 %v200, %v201
    %v203 = vadd.f32 %v186, %v202
    %204 = vst.msk [vmem:[#allocation3] sm:$0x1] %vm171, %v203
    %205 = vst.msk [vmem:[#allocation2] sm:$0x1] %vm171, %v181
    // Predicated region
    $region30: #{tpu_custom_call.1} parent=1 // pred_check
      %p206 = pneg %p53
    $region31: #{tpu_custom_call.1} parent=1 // pred_check_branch
      %208 = sbr.rel (%p206) target = $region33
    $region32: #{tpu_custom_call.1} parent=1 // pred_region
      %v209 = vld [vmem:[#allocation4] sm:$0x1]
      %210 = vst.msk [vmem:[#allocation11] sm:$0x1] %vm171, %v209
      %v211 = vld [vmem:[#allocation2] sm:$0x1]
      %v212 = vld [vmem:[#allocation3] sm:$0x1]
      %v213 = vlog2.pop %v212
      %v214 = vmul.f32 %v213, 0.6931472
      %v215 = vadd.f32 %v211, %v214
      %v216 = vsub.f32 %v215, %v150
      %217 = vst.msk [vmem:[#allocation12] sm:$0x1] %vm171, %v216
    $region33: #{tpu_custom_call.1} parent=1 // pred_fallthru
      _
    // Predicated region
    $region34: #{tpu_custom_call.1} parent=1 // pred_check
      _
    $region35: #{tpu_custom_call.1} parent=1 // pred_check_branch
      %219 = sbr.rel (0) target = $region37
    $region36: #{tpu_custom_call.1} parent=1 // pred_region
      %s221 = ssub.s32 16, 16
      %222 = vsyncadd [#allocation7], %s221
      %s224 = sshll.u32 [#allocation11], 4
      %s225 = int_to_ptr.vmem [resolvable:$true] %s224
      %227 = dma.vmem_to_hbm [thread:$0]  %s225, 16, %s3, [#allocation7]
    $region37: #{tpu_custom_call.1} parent=1 // pred_fallthru
      _
    // Predicated region
    $region38: #{tpu_custom_call.1} parent=1 // pred_check
      _
    $region39: #{tpu_custom_call.1} parent=1 // pred_check_branch
      %229 = sbr.rel (0) target = $region41
    $region40: #{tpu_custom_call.1} parent=1 // pred_region
      %s231 = ssub.s32 16, 16
      %232 = vsyncadd [#allocation13], %s231
      %s234 = sshll.u32 [#allocation12], 4
      %s235 = int_to_ptr.vmem [resolvable:$true] %s234
      %237 = dma.vmem_to_hbm [thread:$0]  %s235, 16, %s4, [#allocation13]
    $region41: #{tpu_custom_call.1} parent=1 // pred_fallthru
      _
    // Predicated region
    $region42: #{tpu_custom_call.1} parent=1 // pred_check
      _
    $region43: #{tpu_custom_call.1} parent=1 // pred_check_branch
      %239 = sbr.rel (0) target = $region45
    $region44: #{tpu_custom_call.1} parent=1 // pred_region
      %240 = dma.done [#allocation7], 16
    $region45: #{tpu_custom_call.1} parent=1 // pred_fallthru
      _
    // Predicated region
    $region46: #{tpu_custom_call.1} parent=1 // pred_check
      _
    $region47: #{tpu_custom_call.1} parent=1 // pred_check_branch
      %242 = sbr.rel (0) target = $region49
    $region48: #{tpu_custom_call.1} parent=1 // pred_region
      %243 = dma.done [#allocation13], 16
    $region49: #{tpu_custom_call.1} parent=1 // pred_fallthru
      _
    %244 = vsyncpa [#allocation6], 1
    %245 = vsyncpa [#allocation9], 1
    %246 = vsyncpa [#allocation7], 1
    %247 = vsyncpa [#allocation13], 1

</llo_original>
